<compile_context>
chip_gen: v7x
topology: tpu7x:2x2x1
jax: 0.10.0
libtpu: 0.0.40
codegen_flags: <defaults>
</compile_context>

<pallas_src>
import jax
import jax.numpy as jnp
from jax.experimental import pallas as pl
from jax.experimental.pallas import tpu as pltpu


def _affine_split_kernel(xa_ref, xb_ref, sa_ref, sb_ref, ba_ref, bb_ref,
                         x_out_ref, z_out_ref):
    """Pure elementwise affine on each channel half: y = x * scale + shift.

    2D path : xa/xb/x_out/z_out are (bn, bd) lane-dense blocks,
              sa/sb/ba/bb are (1, bd) pre-broadcast parameter rows.
    4D path : xa/xb/outs are (bn, half, hw), params are (half, 1).
    Broadcasting works identically in both cases.
    """
    x_out_ref[...] = (xa_ref[...] * sa_ref[...] + ba_ref[...]).astype(x_out_ref.dtype)
    z_out_ref[...] = (xb_ref[...] * sb_ref[...] + bb_ref[...]).astype(z_out_ref.dtype)


def _vmem_limit_bytes():
    """~3/4 of physical VMEM, capped at 96 MiB (96 MiB on v5e/v6e, 48 on v7x)."""
    cap = 64 * 1024 * 1024  # assume the smallest-VMEM generation if query fails
    try:
        cap = int(getattr(pltpu.get_tpu_info(), "vmem_capacity_bytes", cap))
    except Exception:
        pass
    return min((cap * 3) // 4, 96 * 1024 * 1024)


def _plan_lane_dense(n, d, vmem_limit, itemsize):
    """Pick (bn, bd): batch rows per block and lane width per block.

    bn is a divisor of n that is either n itself or a multiple of 8;
    bd is a multiple-of-128 divisor of d.  The plan keeps
    2 (buffers) x (4 data streams + 4 padded param rows) within ~80% of the
    VMEM limit, and guarantees >= 2 grid points when the shape allows it
    (so the "parallel" axes can shard across both v7x TensorCores).
    """
    usable = int(vmem_limit * 0.80)

    def fits(bn, bd):
        main = 4 * bn * bd * itemsize        # 2 input + 2 output streams
        params = 4 * 8 * bd * itemsize       # param rows, sublane-padded 1 -> 8
        return 2 * (main + params) <= usable  # double-buffered

    m = d // 128
    d_cands = sorted((128 * k for k in range(1, m + 1) if m % k == 0), reverse=True)
    n_cands = sorted((k for k in range(1, n + 1)
                      if n % k == 0 and (k == n or k % 8 == 0)), reverse=True)

    best = None
    for bn in n_cands:
        for bd in d_cands:
            if fits(bn, bd):
                score = (bn * bd, bd)
                if best is None or score > best[0]:
                    best = (score, bn, bd)
                break
    if best is None:
        bn, bd = min(n_cands), 128   # smallest legal block; compiles regardless
    else:
        bn, bd = best[1], best[2]

    # Megacore: ensure >= 2 grid points when possible.
    if (n // bn) * (d // bd) < 2:
        smaller_d = [c for c in d_cands if c < bd]
        smaller_n = [c for c in n_cands if c < bn]
        if smaller_d:
            bd = smaller_d[0]
        elif smaller_n:
            bn = smaller_n[0]
    return bn, bd


def _plan_batch_block(n, half, hw, vmem_limit, itemsize):
    """Fallback planner (4D path): largest divisor of n fitting the VMEM plan,
    accounting for sublane/lane padding, keeping >= 2 grid steps when n >= 2."""
    usable = int(vmem_limit * 0.80)
    half_pad = -(-half // 8) * 8
    hw_pad = -(-hw // 128) * 128
    per_batch = half_pad * hw_pad * itemsize
    bn = 1
    for cand in range(n, 0, -1):
        if n % cand == 0 and 2 * 4 * cand * per_batch <= usable:
            bn = cand
            break
    if n >= 2 and n // bn < 2:
        for cand in range(bn - 1, 0, -1):
            if n % cand == 0:
                bn = cand
                break
    return bn


@jax.jit
def split_op_forward(x_nchw, logscale, bias):
    """Forward pass of SplitOp.

    x_nchw   : (N, C, H, W)
    logscale : (C,)  -- ActNorm log-scale
    bias     : (C,)  -- ActNorm bias
    returns  : (x_half (N, C//2, H, W), z (N, C//2, H, W), logdet (N,))
    """
    n, c, h, w = x_nchw.shape
    assert c % 2 == 0, "Split requires an even number of channels"
    half = c // 2
    hw = h * w
    d = half * hw
    itemsize = jnp.dtype(x_nchw.dtype).itemsize
    vmem_limit = _vmem_limit_bytes()

    # Hoisted flow parameters:  (x + bias) * exp(logscale) == x * scale + shift
    scale_f32 = jnp.exp(logscale.astype(jnp.float32))
    scale = scale_f32.astype(x_nchw.dtype)                       # (C,)
    shift = (bias.astype(jnp.float32) * scale_f32).astype(x_nchw.dtype)  # (C,)

    if d % 128 == 0:
        # ---- Lane-dense 2D path -----------------------------------------
        bn, bd = _plan_lane_dense(n, d, vmem_limit, itemsize)
        num_db = d // bd
        grid = (n // bn, num_db)

        x2 = x_nchw.reshape(n, 2 * d)
        scale_row = jnp.broadcast_to(scale[:, None], (c, hw)).reshape(1, 2 * d)
        shift_row = jnp.broadcast_to(shift[:, None], (c, hw)).reshape(1, 2 * d)

        data_spec_a = pl.BlockSpec((bn, bd), lambda b, j: (b, j))
        data_spec_b = pl.BlockSpec((bn, bd), lambda b, j: (b, num_db + j))
        param_spec_a = pl.BlockSpec((1, bd), lambda b, j: (0, j))
        param_spec_b = pl.BlockSpec((1, bd), lambda b, j: (0, num_db + j))
        out_spec = pl.BlockSpec((bn, bd), lambda b, j: (b, j))

        grid_spec = pltpu.PrefetchScalarGridSpec(
            num_scalar_prefetch=0,
            grid=grid,
            in_specs=[data_spec_a, data_spec_b,
                      param_spec_a, param_spec_b,
                      param_spec_a, param_spec_b],
            out_specs=[out_spec, out_spec],
        )

        x_out, z_out = pl.pallas_call(
            _affine_split_kernel,
            grid_spec=grid_spec,
            out_shape=(
                jax.ShapeDtypeStruct((n, d), x_nchw.dtype),
                jax.ShapeDtypeStruct((n, d), x_nchw.dtype),
            ),
            compiler_params=pltpu.CompilerParams(
                dimension_semantics=("parallel", "parallel"),
                vmem_limit_bytes=vmem_limit,
            ),
        )(x2, x2, scale_row, scale_row, shift_row, shift_row)
    else:
        # ---- Fallback 4D path (always BlockSpec-legal) --------------------
        bn = _plan_batch_block(n, half, hw, vmem_limit, itemsize)
        grid = (n // bn,)

        x4 = x_nchw.reshape(n, 2, half, hw)
        scale_a = scale[:half].reshape(half, 1)
        scale_b = scale[half:].reshape(half, 1)
        shift_a = shift[:half].reshape(half, 1)
        shift_b = shift[half:].reshape(half, 1)

        half_block = (bn, None, half, hw)
        grid_spec = pltpu.PrefetchScalarGridSpec(
            num_scalar_prefetch=0,
            grid=grid,
            in_specs=[
                pl.BlockSpec(half_block, lambda b: (b, 0, 0, 0)),
                pl.BlockSpec(half_block, lambda b: (b, 1, 0, 0)),
                pl.BlockSpec((half, 1), lambda b: (0, 0)),
                pl.BlockSpec((half, 1), lambda b: (0, 0)),
                pl.BlockSpec((half, 1), lambda b: (0, 0)),
                pl.BlockSpec((half, 1), lambda b: (0, 0)),
            ],
            out_specs=[
                pl.BlockSpec((bn, half, hw), lambda b: (b, 0, 0)),
                pl.BlockSpec((bn, half, hw), lambda b: (b, 0, 0)),
            ],
        )

        x_out, z_out = pl.pallas_call(
            _affine_split_kernel,
            grid_spec=grid_spec,
            out_shape=(
                jax.ShapeDtypeStruct((n, half, hw), x_nchw.dtype),
                jax.ShapeDtypeStruct((n, half, hw), x_nchw.dtype),
            ),
            compiler_params=pltpu.CompilerParams(
                dimension_semantics=("parallel",),
                vmem_limit_bytes=vmem_limit,
            ),
        )(x4, x4, scale_a, scale_b, shift_a, shift_b)

    # logdet = H*W * sum_c logscale, identical for every batch element.
    logdet = jnp.full((n,),
                      jnp.float32(hw) * jnp.sum(logscale.astype(jnp.float32)),
                      dtype=jnp.float32)

    return (x_out.reshape(n, half, h, w),
            z_out.reshape(n, half, h, w),
            logdet)


def _reference(x_nchw, logscale, bias):
    """Pure-JAX reference for correctness check."""
    n, c, h, w = x_nchw.shape
    y = (x_nchw + bias[None, :, None, None]) * jnp.exp(logscale)[None, :, None, None]
    half = c // 2
    logdet = jnp.full((n,), h * w * jnp.sum(logscale), dtype=jnp.float32)
    return y[:, :half], y[:, half:], logdet


if __name__ == "__main__":
    key = jax.random.PRNGKey(0)
    N, C, H, W = 2, 4, 16, 16

    kx, ks, kb = jax.random.split(key, 3)
    x = jax.random.normal(kx, (N, C, H, W), dtype=jnp.float32)
    # Deterministic "parameters" of the ActNorm flow.
    logscale = 0.05 * jax.random.normal(ks, (C,), dtype=jnp.float32)
    bias = 0.10 * jax.random.normal(kb, (C,), dtype=jnp.float32)

    x_out, z_out, logdet = split_op_forward(x, logscale, bias)
    jax.block_until_ready((x_out, z_out, logdet))

    x_ref, z_ref, ld_ref = _reference(x, logscale, bias)
    assert x_out.shape == (N, C // 2, H, W)
    assert z_out.shape == (N, C // 2, H, W)
    assert logdet.shape == (N,)
    assert jnp.allclose(x_out, x_ref, atol=1e-5, rtol=1e-5)
    assert jnp.allclose(z_out, z_ref, atol=1e-5, rtol=1e-5)
    assert jnp.allclose(logdet, ld_ref, atol=1e-5, rtol=1e-5)

    print("KERNEL_OK")
</pallas_src>

<mosaic_0001>
module attributes {stable_mosaic.version = 11 : i64} {
  func.func @_affine_split_kernel(%arg0: i32, %arg1: i32, %arg2: memref<2x256xf32, #tpu.memory_space<vmem>>, %arg3: memref<2x256xf32, #tpu.memory_space<vmem>>, %arg4: memref<1x256xf32, #tpu.memory_space<vmem>>, %arg5: memref<1x256xf32, #tpu.memory_space<vmem>>, %arg6: memref<1x256xf32, #tpu.memory_space<vmem>>, %arg7: memref<1x256xf32, #tpu.memory_space<vmem>>, %arg8: memref<2x256xf32, #tpu.memory_space<vmem>>, %arg9: memref<2x256xf32, #tpu.memory_space<vmem>>) attributes {dimension_semantics = [#tpu.dimension_semantics<parallel>, #tpu.dimension_semantics<parallel>], iteration_bounds = array<i64: 1, 2>, scalar_prefetch = 0 : i64, scratch_operands = 0 : i64, tpu.core_type = #tpu.core_type<tc>, window_params = [{transform_indices = @transform_0, window_bounds = array<i64: 2, 256>}, {transform_indices = @transform_1, window_bounds = array<i64: 2, 256>}, {transform_indices = @transform_2, window_bounds = array<i64: 1, 256>}, {transform_indices = @transform_3, window_bounds = array<i64: 1, 256>}, {transform_indices = @transform_4, window_bounds = array<i64: 1, 256>}, {transform_indices = @transform_5, window_bounds = array<i64: 1, 256>}, {transform_indices = @transform_6, window_bounds = array<i64: 2, 256>}, {transform_indices = @transform_7, window_bounds = array<i64: 2, 256>}]} {
    %c0 = arith.constant 0 : index
    %c0_0 = arith.constant 0 : index
    %0 = vector.load %arg2[%c0, %c0_0] : memref<2x256xf32, #tpu.memory_space<vmem>>, vector<2x256xf32>
    %c0_1 = arith.constant 0 : index
    %c0_2 = arith.constant 0 : index
    %1 = vector.load %arg4[%c0_1, %c0_2] : memref<1x256xf32, #tpu.memory_space<vmem>>, vector<1x256xf32>
    %2 = vector.broadcast %1 : vector<1x256xf32> to vector<2x256xf32>
    %3 = arith.mulf %0, %2 : vector<2x256xf32>
    %c0_3 = arith.constant 0 : index
    %c0_4 = arith.constant 0 : index
    %4 = vector.load %arg6[%c0_3, %c0_4] : memref<1x256xf32, #tpu.memory_space<vmem>>, vector<1x256xf32>
    %5 = vector.broadcast %4 : vector<1x256xf32> to vector<2x256xf32>
    %6 = arith.addf %3, %5 : vector<2x256xf32>
    %c0_5 = arith.constant 0 : index
    %c0_6 = arith.constant 0 : index
    %7 = vector.load %arg8[%c0_5, %c0_6] : memref<2x256xf32, #tpu.memory_space<vmem>>, vector<2x256xf32>
    tpu.vector_store %arg8[%c0_5, %c0_6], %6 {strides = array<i32>} : memref<2x256xf32, #tpu.memory_space<vmem>>, vector<2x256xf32>,
    %c0_7 = arith.constant 0 : index
    %c0_8 = arith.constant 0 : index
    %8 = vector.load %arg3[%c0_7, %c0_8] : memref<2x256xf32, #tpu.memory_space<vmem>>, vector<2x256xf32>
    %c0_9 = arith.constant 0 : index
    %c0_10 = arith.constant 0 : index
    %9 = vector.load %arg5[%c0_9, %c0_10] : memref<1x256xf32, #tpu.memory_space<vmem>>, vector<1x256xf32>
    %10 = vector.broadcast %9 : vector<1x256xf32> to vector<2x256xf32>
    %11 = arith.mulf %8, %10 : vector<2x256xf32>
    %c0_11 = arith.constant 0 : index
    %c0_12 = arith.constant 0 : index
    %12 = vector.load %arg7[%c0_11, %c0_12] : memref<1x256xf32, #tpu.memory_space<vmem>>, vector<1x256xf32>
    %13 = vector.broadcast %12 : vector<1x256xf32> to vector<2x256xf32>
    %14 = arith.addf %11, %13 : vector<2x256xf32>
    %c0_13 = arith.constant 0 : index
    %c0_14 = arith.constant 0 : index
    %15 = vector.load %arg9[%c0_13, %c0_14] : memref<2x256xf32, #tpu.memory_space<vmem>>, vector<2x256xf32>
    tpu.vector_store %arg9[%c0_13, %c0_14], %14 {strides = array<i32>} : memref<2x256xf32, #tpu.memory_space<vmem>>, vector<2x256xf32>,
    return
  }
  func.func @transform_0(%arg0: i32, %arg1: i32) -> (i32, i32) {
    %c0_i32 = arith.constant 0 : i32
    return %arg0, %arg1 : i32, i32
  }
  func.func @transform_1(%arg0: i32, %arg1: i32) -> (i32, i32) {
    %c2_i32 = arith.constant 2 : i32
    %0 = arith.addi %c2_i32, %arg1 : i32
    %c0_i32 = arith.constant 0 : i32
    return %arg0, %0 : i32, i32
  }
  func.func @transform_2(%arg0: i32, %arg1: i32) -> (i32, i32) {
    %c0_i32 = arith.constant 0 : i32
    %c0_i32_0 = arith.constant 0 : i32
    return %c0_i32, %arg1 : i32, i32
  }
  func.func @transform_3(%arg0: i32, %arg1: i32) -> (i32, i32) {
    %c2_i32 = arith.constant 2 : i32
    %0 = arith.addi %c2_i32, %arg1 : i32
    %c0_i32 = arith.constant 0 : i32
    %c0_i32_0 = arith.constant 0 : i32
    return %c0_i32, %0 : i32, i32
  }
  func.func @transform_4(%arg0: i32, %arg1: i32) -> (i32, i32) {
    %c0_i32 = arith.constant 0 : i32
    %c0_i32_0 = arith.constant 0 : i32
    return %c0_i32, %arg1 : i32, i32
  }
  func.func @transform_5(%arg0: i32, %arg1: i32) -> (i32, i32) {
    %c2_i32 = arith.constant 2 : i32
    %0 = arith.addi %c2_i32, %arg1 : i32
    %c0_i32 = arith.constant 0 : i32
    %c0_i32_0 = arith.constant 0 : i32
    return %c0_i32, %0 : i32, i32
  }
  func.func @transform_6(%arg0: i32, %arg1: i32) -> (i32, i32) {
    %c0_i32 = arith.constant 0 : i32
    return %arg0, %arg1 : i32, i32
  }
  func.func @transform_7(%arg0: i32, %arg1: i32) -> (i32, i32) {
    %c0_i32 = arith.constant 0 : i32
    return %arg0, %arg1 : i32, i32
  }
}

</mosaic_0001>

<llo_original>
// kernel: split_op_forward.1
$region0: #{split_op_forward.1}
  #allocation0 [shape = 'u32[]', space=smem, size = 0x4, offset = 0x4, fixed_abs, tag = 'smem constant byte address 0x4 - core index']
  #allocation1 [shape = 'u32[144,128]{1,0:T(1,128)}', space=vmem, size = 0x12000, scoped, tag = 'internal scratch']
  %s0 = inlined_call_operand.vmem [shape: f32[2,1024], index: 0, kind: input, shape index: {}, may-alias: {0,1}]
  %s1 = inlined_call_operand.vmem [shape: f32[2,1024], index: 1, kind: input, shape index: {}, may-alias: {0,1}]
  %s2 = inlined_call_operand.vmem [shape: f32[1,1024], index: 2, kind: input, shape index: {}, may-alias: {2,3}]
  %s3 = inlined_call_operand.vmem [shape: f32[1,1024], index: 3, kind: input, shape index: {}, may-alias: {2,3}]
  %s4 = inlined_call_operand.vmem [shape: f32[1,1024], index: 4, kind: input, shape index: {}, may-alias: {4,5}]
  %s5 = inlined_call_operand.vmem [shape: f32[1,1024], index: 5, kind: input, shape index: {}, may-alias: {4,5}]
  %s6 = inlined_call_operand.vmem [shape: f32[2,512], index: 6, kind: output, shape index: {0}]
  %s7 = inlined_call_operand.vmem [shape: f32[2,512], index: 7, kind: output, shape index: {1}]
  %8 = xla_tuple %s6, %s7
  %s9 = sld [smem:[#allocation0]]
  $region65: #{split_op_forward.1} parent=0
    _
  %s11 = ssub.s32 1, %s9
  %s12 = scalar_select 0, %s11, %s9
  loop: start=0, step=1, limit=4
  $region2: #{split_op_forward.1} parent=0 // loop_pre_header
    _
  $region3: #{split_op_forward.1} parent=0 // loop_header
    %s14 = sphi 0, %s18
    %p15 = scmp.ge.s32.totalorder %s14, 4
    %s21 = sphi 0, %s33
    %s22 = sphi 0, %s29
    %s23 = sphi 0, %s21
    %s24 = sphi 0, %s22
    %s25 = sphi 0, %s23
    %s26 = sphi 0, %s24
    %s38 = sphi 0, %s40
    %s41 = sphi 0, %s38
    %s42 = sphi 0, %s41
    %s58 = sphi 0, %s42
    %s68 = sphi 0, %s70
    %s71 = sphi 0, %s68
    %s72 = sphi 0, %s71
    %s88 = sphi 0, %s72
    %s94 = sphi 0, %s96
    %s97 = sphi 0, %s94
    %s98 = sphi 0, %s97
    %s114 = sphi 0, %s98
    %s122 = sphi 0, %s124
    %s125 = sphi 0, %s122
    %s126 = sphi 0, %s125
    %s142 = sphi 0, %s126
    %s148 = sphi 0, %s150
    %s151 = sphi 0, %s148
    %s152 = sphi 0, %s151
    %s168 = sphi 0, %s152
    %s176 = sphi 0, %s178
    %s179 = sphi 0, %s176
    %s180 = sphi 0, %s179
    %s196 = sphi 0, %s180
    %s204 = sphi 0, %s206
    %s207 = sphi 0, %s204
    %s208 = sphi 0, %s207
    %s224 = sphi 0, %s208
    %s232 = sphi 0, %s234
    %s235 = sphi 0, %s232
    %s236 = sphi 0, %s235
    %s252 = sphi 0, %s236
  $region4: #{split_op_forward.1} parent=0 // loop_header_branch
    %17 = sbr.rel (%p15) target = $region8
  $region5: #{split_op_forward.1} parent=0 // loop_body
    %s19 = ssub.s32 %s14, 1
    %s20 = ssub.s32 %s14, 2
    %s27 = sadd.s32 1, %s22
    %p28 = scmp.ge.s32.totalorder %s27, 2
    %s29 = scalar_select %p28, 0, %s27
    %s30 = sadd.s32 1, %s21
    %s31 = scalar_select %p28, %s30, %s21
    %p32 = scmp.ge.s32.totalorder %s31, 1
    %s33 = scalar_select %p32, 0, %s31
    %s34 = ssub.s32 %s21, %s33
    %s35 = ssub.s32 %s22, %s29
    %s36 = sor.u32 %s34, %s35
    %p37 = scmp.eq.s32.totalorder %s36, 0
    %s39 = sadd.s32 %s38, 1
    %s40 = scalar_select %p37, %s38, %s39
    %p43 = pneg %p37
    %p44 = scmp.eq.s32.totalorder %s14, 1
    %p45 = por %p43, %p44
    %p46 = scmp.ne.s32.totalorder %s38, %s41
    %p47 = scmp.eq.s32.totalorder %s14, 0
    %p48 = por %p46, %p47
    %p49 = scmp.ne.s32.totalorder %s38, %s41
    %p50 = scmp.eq.s32.totalorder %s19, 1
    %p51 = por %p49, %p50
    %p52 = scmp.ne.s32.totalorder %s41, %s42
    %p53 = scmp.eq.s32.totalorder %s19, 0
    %p54 = por %p52, %p53
    %p55 = scmp.ne.s32.totalorder %s41, %s42
    %p56 = scmp.eq.s32.totalorder %s20, 1
    %p57 = por %p55, %p56
    %p59 = scmp.ne.s32.totalorder %s42, %s58
    %p60 = scmp.eq.s32.totalorder %s20, 0
    %p61 = por %p59, %p60
    %s62 = sadd.s32 %s22, 2
    %s63 = sadd.s32 %s29, 2
    %s64 = ssub.s32 %s21, %s33
    %s65 = ssub.s32 %s62, %s63
    %s66 = sor.u32 %s64, %s65
    %p67 = scmp.eq.s32.totalorder %s66, 0
    %s69 = sadd.s32 %s68, 1
    %s70 = scalar_select %p67, %s68, %s69
    %p73 = pneg %p67
    %p74 = scmp.eq.s32.totalorder %s14, 1
    %p75 = por %p73, %p74
    %p76 = scmp.ne.s32.totalorder %s68, %s71
    %p77 = scmp.eq.s32.totalorder %s14, 0
    %p78 = por %p76, %p77
    %p79 = scmp.ne.s32.totalorder %s68, %s71
    %p80 = scmp.eq.s32.totalorder %s19, 1
    %p81 = por %p79, %p80
    %p82 = scmp.ne.s32.totalorder %s71, %s72
    %p83 = scmp.eq.s32.totalorder %s19, 0
    %p84 = por %p82, %p83
    %p85 = scmp.ne.s32.totalorder %s71, %s72
    %p86 = scmp.eq.s32.totalorder %s20, 1
    %p87 = por %p85, %p86
    %p89 = scmp.ne.s32.totalorder %s72, %s88
    %p90 = scmp.eq.s32.totalorder %s20, 0
    %p91 = por %p89, %p90
    %s92 = ssub.s32 %s22, %s29
    %p93 = scmp.eq.s32.totalorder %s92, 0
    %s95 = sadd.s32 %s94, 1
    %s96 = scalar_select %p93, %s94, %s95
    %p99 = pneg %p93
    %p100 = scmp.eq.s32.totalorder %s14, 1
    %p101 = por %p99, %p100
    %p102 = scmp.ne.s32.totalorder %s94, %s97
    %p103 = scmp.eq.s32.totalorder %s14, 0
    %p104 = por %p102, %p103
    %p105 = scmp.ne.s32.totalorder %s94, %s97
    %p106 = scmp.eq.s32.totalorder %s19, 1
    %p107 = por %p105, %p106
    %p108 = scmp.ne.s32.totalorder %s97, %s98
    %p109 = scmp.eq.s32.totalorder %s19, 0
    %p110 = por %p108, %p109
    %p111 = scmp.ne.s32.totalorder %s97, %s98
    %p112 = scmp.eq.s32.totalorder %s20, 1
    %p113 = por %p111, %p112
    %p115 = scmp.ne.s32.totalorder %s98, %s114
    %p116 = scmp.eq.s32.totalorder %s20, 0
    %p117 = por %p115, %p116
    %s118 = sadd.s32 %s22, 2
    %s119 = sadd.s32 %s29, 2
    %s120 = ssub.s32 %s118, %s119
    %p121 = scmp.eq.s32.totalorder %s120, 0
    %s123 = sadd.s32 %s122, 1
    %s124 = scalar_select %p121, %s122, %s123
    %p127 = pneg %p121
    %p128 = scmp.eq.s32.totalorder %s14, 1
    %p129 = por %p127, %p128
    %p130 = scmp.ne.s32.totalorder %s122, %s125
    %p131 = scmp.eq.s32.totalorder %s14, 0
    %p132 = por %p130, %p131
    %p133 = scmp.ne.s32.totalorder %s122, %s125
    %p134 = scmp.eq.s32.totalorder %s19, 1
    %p135 = por %p133, %p134
    %p136 = scmp.ne.s32.totalorder %s125, %s126
    %p137 = scmp.eq.s32.totalorder %s19, 0
    %p138 = por %p136, %p137
    %p139 = scmp.ne.s32.totalorder %s125, %s126
    %p140 = scmp.eq.s32.totalorder %s20, 1
    %p141 = por %p139, %p140
    %p143 = scmp.ne.s32.totalorder %s126, %s142
    %p144 = scmp.eq.s32.totalorder %s20, 0
    %p145 = por %p143, %p144
    %s146 = ssub.s32 %s22, %s29
    %p147 = scmp.eq.s32.totalorder %s146, 0
    %s149 = sadd.s32 %s148, 1
    %s150 = scalar_select %p147, %s148, %s149
    %p153 = pneg %p147
    %p154 = scmp.eq.s32.totalorder %s14, 1
    %p155 = por %p153, %p154
    %p156 = scmp.ne.s32.totalorder %s148, %s151
    %p157 = scmp.eq.s32.totalorder %s14, 0
    %p158 = por %p156, %p157
    %p159 = scmp.ne.s32.totalorder %s148, %s151
    %p160 = scmp.eq.s32.totalorder %s19, 1
    %p161 = por %p159, %p160
    %p162 = scmp.ne.s32.totalorder %s151, %s152
    %p163 = scmp.eq.s32.totalorder %s19, 0
    %p164 = por %p162, %p163
    %p165 = scmp.ne.s32.totalorder %s151, %s152
    %p166 = scmp.eq.s32.totalorder %s20, 1
    %p167 = por %p165, %p166
    %p169 = scmp.ne.s32.totalorder %s152, %s168
    %p170 = scmp.eq.s32.totalorder %s20, 0
    %p171 = por %p169, %p170
    %s172 = sadd.s32 %s22, 2
    %s173 = sadd.s32 %s29, 2
    %s174 = ssub.s32 %s172, %s173
    %p175 = scmp.eq.s32.totalorder %s174, 0
    %s177 = sadd.s32 %s176, 1
    %s178 = scalar_select %p175, %s176, %s177
    %p181 = pneg %p175
    %p182 = scmp.eq.s32.totalorder %s14, 1
    %p183 = por %p181, %p182
    %p184 = scmp.ne.s32.totalorder %s176, %s179
    %p185 = scmp.eq.s32.totalorder %s14, 0
    %p186 = por %p184, %p185
    %p187 = scmp.ne.s32.totalorder %s176, %s179
    %p188 = scmp.eq.s32.totalorder %s19, 1
    %p189 = por %p187, %p188
    %p190 = scmp.ne.s32.totalorder %s179, %s180
    %p191 = scmp.eq.s32.totalorder %s19, 0
    %p192 = por %p190, %p191
    %p193 = scmp.ne.s32.totalorder %s179, %s180
    %p194 = scmp.eq.s32.totalorder %s20, 1
    %p195 = por %p193, %p194
    %p197 = scmp.ne.s32.totalorder %s180, %s196
    %p198 = scmp.eq.s32.totalorder %s20, 0
    %p199 = por %p197, %p198
    %s200 = ssub.s32 %s21, %s33
    %s201 = ssub.s32 %s22, %s29
    %s202 = sor.u32 %s200, %s201
    %p203 = scmp.eq.s32.totalorder %s202, 0
    %s205 = sadd.s32 %s204, 1
    %s206 = scalar_select %p203, %s204, %s205
    %p209 = pneg %p203
    %p210 = scmp.eq.s32.totalorder %s14, 1
    %p211 = por %p209, %p210
    %p212 = scmp.ne.s32.totalorder %s204, %s207
    %p213 = scmp.eq.s32.totalorder %s14, 0
    %p214 = por %p212, %p213
    %p215 = scmp.ne.s32.totalorder %s204, %s207
    %p216 = scmp.eq.s32.totalorder %s19, 1
    %p217 = por %p215, %p216
    %p218 = scmp.ne.s32.totalorder %s207, %s208
    %p219 = scmp.eq.s32.totalorder %s19, 0
    %p220 = por %p218, %p219
    %p221 = scmp.ne.s32.totalorder %s207, %s208
    %p222 = scmp.eq.s32.totalorder %s20, 1
    %p223 = por %p221, %p222
    %p225 = scmp.ne.s32.totalorder %s208, %s224
    %p226 = scmp.eq.s32.totalorder %s20, 0
    %p227 = por %p225, %p226
    %s228 = ssub.s32 %s21, %s33
    %s229 = ssub.s32 %s22, %s29
    %s230 = sor.u32 %s228, %s229
    %p231 = scmp.eq.s32.totalorder %s230, 0
    %s233 = sadd.s32 %s232, 1
    %s234 = scalar_select %p231, %s232, %s233
    %p237 = pneg %p231
    %p238 = scmp.eq.s32.totalorder %s14, 1
    %p239 = por %p237, %p238
    %p240 = scmp.ne.s32.totalorder %s232, %s235
    %p241 = scmp.eq.s32.totalorder %s14, 0
    %p242 = por %p240, %p241
    %p243 = scmp.ne.s32.totalorder %s232, %s235
    %p244 = scmp.eq.s32.totalorder %s19, 1
    %p245 = por %p243, %p244
    %p246 = scmp.ne.s32.totalorder %s235, %s236
    %p247 = scmp.eq.s32.totalorder %s19, 0
    %p248 = por %p246, %p247
    %p249 = scmp.ne.s32.totalorder %s235, %s236
    %p250 = scmp.eq.s32.totalorder %s20, 1
    %p251 = por %p249, %p250
    %p253 = scmp.ne.s32.totalorder %s236, %s252
    %p254 = scmp.eq.s32.totalorder %s20, 0
    %p255 = por %p253, %p254
    %p256 = scmp.le.s32.totalorder 1, %s14
    %p257 = scmp.lt.s32.totalorder %s14, 3
    %p258 = pnand %p256, %p257
    %p259 = pneg %p258
    // Predicated region
    $region9: #{split_op_forward.1} parent=5 // pred_check
      _
    $region10: #{split_op_forward.1} parent=5 // pred_check_branch
      %261 = sbr.rel (%p258) target = $region12
    $region11: #{split_op_forward.1} parent=5 // pred_region
      %s262 = ssub.s32 %s14, 1
    $region12: #{split_op_forward.1} parent=5 // pred_fallthru
      _
    %p263 = scmp.lt.s32.totalorder %s14, 2
    // Predicated region
    $region13: #{split_op_forward.1} parent=5 // pred_check
      %p264 = pneg %p263
    $region14: #{split_op_forward.1} parent=5 // pred_check_branch
      %266 = sbr.rel (%p264) target = $region16
    $region15: #{split_op_forward.1} parent=5 // pred_region
      // Predicated region
      $region17: #{split_op_forward.1} parent=15 // pred_check
        %p267 = pneg %p48
      $region18: #{split_op_forward.1} parent=15 // pred_check_branch
        %269 = sbr.rel (%p267) target = $region20
      $region19: #{split_op_forward.1} parent=15 // pred_region
        %s270 = smul.u32 2, %s22
        %p271 = scmp.lt.s32.totalorder %s21, 0
        %s272 = scalar_select %p271, %s21, 0
        %p273 = scmp.lt.s32.totalorder %s270, 7
        %s274 = scalar_select %p273, %s270, 7
        %s275 = smul.addr %s272, 8
        %s276 = sadd.s32 %s274, %s275
        %s277 = smul.addr %s276, 2
        %s278 = scalar_lea.vmem %s0, %s277
        %s279 = smul.u32 2, %s22
      $region20: #{split_op_forward.1} parent=15 // pred_fallthru
        _
      // Predicated region
      $region21: #{split_op_forward.1} parent=15 // pred_check
        %p280 = pneg %p78
      $region22: #{split_op_forward.1} parent=15 // pred_check_branch
        %282 = sbr.rel (%p280) target = $region24
      $region23: #{split_op_forward.1} parent=15 // pred_region
        %s283 = sadd.s32 %s22, 2
        %s284 = smul.u32 2, %s283
        %p285 = scmp.lt.s32.totalorder %s21, 0
        %s286 = scalar_select %p285, %s21, 0
        %p287 = scmp.lt.s32.totalorder %s284, 7
        %s288 = scalar_select %p287, %s284, 7
        %s289 = smul.addr %s286, 8
        %s290 = sadd.s32 %s288, %s289
        %s291 = smul.addr %s290, 2
        %s292 = scalar_lea.vmem %s1, %s291
        %s293 = sadd.s32 %s22, 2
        %s294 = smul.u32 2, %s293
      $region24: #{split_op_forward.1} parent=15 // pred_fallthru
        _
      // Predicated region
      $region25: #{split_op_forward.1} parent=15 // pred_check
        %p295 = pneg %p104
      $region26: #{split_op_forward.1} parent=15 // pred_check_branch
        %297 = sbr.rel (%p295) target = $region28
      $region27: #{split_op_forward.1} parent=15 // pred_region
        %s298 = smul.u32 2, %s22
        %p299 = scmp.lt.s32.totalorder %s298, 7
        %s300 = scalar_select %p299, %s298, 7
        %s301 = scalar_lea.vmem %s2, %s300
        %s302 = smul.u32 2, %s22
      $region28: #{split_op_forward.1} parent=15 // pred_fallthru
        _
      // Predicated region
      $region29: #{split_op_forward.1} parent=15 // pred_check
        %p303 = pneg %p132
      $region30: #{split_op_forward.1} parent=15 // pred_check_branch
        %305 = sbr.rel (%p303) target = $region32
      $region31: #{split_op_forward.1} parent=15 // pred_region
        %s306 = sadd.s32 %s22, 2
        %s307 = smul.u32 2, %s306
        %p308 = scmp.lt.s32.totalorder %s307, 7
        %s309 = scalar_select %p308, %s307, 7
        %s310 = scalar_lea.vmem %s3, %s309
        %s311 = sadd.s32 %s22, 2
        %s312 = smul.u32 2, %s311
      $region32: #{split_op_forward.1} parent=15 // pred_fallthru
        _
      // Predicated region
      $region33: #{split_op_forward.1} parent=15 // pred_check
        %p313 = pneg %p158
      $region34: #{split_op_forward.1} parent=15 // pred_check_branch
        %315 = sbr.rel (%p313) target = $region36
      $region35: #{split_op_forward.1} parent=15 // pred_region
        %s316 = smul.u32 2, %s22
        %p317 = scmp.lt.s32.totalorder %s316, 7
        %s318 = scalar_select %p317, %s316, 7
        %s319 = scalar_lea.vmem %s4, %s318
        %s320 = smul.u32 2, %s22
      $region36: #{split_op_forward.1} parent=15 // pred_fallthru
        _
      // Predicated region
      $region37: #{split_op_forward.1} parent=15 // pred_check
        %p321 = pneg %p186
      $region38: #{split_op_forward.1} parent=15 // pred_check_branch
        %323 = sbr.rel (%p321) target = $region40
      $region39: #{split_op_forward.1} parent=15 // pred_region
        %s324 = sadd.s32 %s22, 2
        %s325 = smul.u32 2, %s324
        %p326 = scmp.lt.s32.totalorder %s325, 7
        %s327 = scalar_select %p326, %s325, 7
        %s328 = scalar_lea.vmem %s5, %s327
        %s329 = sadd.s32 %s22, 2
        %s330 = smul.u32 2, %s329
      $region40: #{split_op_forward.1} parent=15 // pred_fallthru
        _
    $region16: #{split_op_forward.1} parent=5 // pred_fallthru
      _
    %p331 = scmp.le.s32.totalorder 1, %s14
    %p332 = scmp.lt.s32.totalorder %s14, 3
    %p333 = pnand %p331, %p332
    %p334 = pneg %p333
    // Predicated region
    $region41: #{split_op_forward.1} parent=5 // pred_check
      _
    $region42: #{split_op_forward.1} parent=5 // pred_check_branch
      %336 = sbr.rel (%p333) target = $region44
    $region43: #{split_op_forward.1} parent=5 // pred_region
      %s337 = ssub.s32 %s14, 1
      %s338 = smul.u32 2, %s24
      %p339 = scmp.lt.s32.totalorder %s23, 0
      %s340 = scalar_select %p339, %s23, 0
      %p341 = scmp.lt.s32.totalorder %s338, 7
      %s342 = scalar_select %p341, %s338, 7
      %s343 = smul.addr %s340, 8
      %s344 = sadd.s32 %s342, %s343
      %s345 = smul.addr %s344, 2
      %s346 = scalar_lea.vmem %s0, %s345
      %p347 = pneg %p54
      %p348 = pneg %p51
      %s349 = sadd.s32 %s24, 2
      %s350 = smul.u32 2, %s349
      %p351 = scmp.lt.s32.totalorder %s23, 0
      %s352 = scalar_select %p351, %s23, 0
      %p353 = scmp.lt.s32.totalorder %s350, 7
      %s354 = scalar_select %p353, %s350, 7
      %s355 = smul.addr %s352, 8
      %s356 = sadd.s32 %s354, %s355
      %s357 = smul.addr %s356, 2
      %s358 = scalar_lea.vmem %s1, %s357
      %p359 = pneg %p84
      %p360 = pneg %p81
      %s361 = smul.u32 2, %s24
      %p362 = scmp.lt.s32.totalorder %s361, 7
      %s363 = scalar_select %p362, %s361, 7
      %s364 = scalar_lea.vmem %s2, %s363
      %p365 = pneg %p110
      %p366 = pneg %p107
      %s367 = sadd.s32 %s24, 2
      %s368 = smul.u32 2, %s367
      %p369 = scmp.lt.s32.totalorder %s368, 7
      %s370 = scalar_select %p369, %s368, 7
      %s371 = scalar_lea.vmem %s3, %s370
      %p372 = pneg %p138
      %p373 = pneg %p135
      %s374 = smul.u32 2, %s24
      %p375 = scmp.lt.s32.totalorder %s374, 7
      %s376 = scalar_select %p375, %s374, 7
      %s377 = scalar_lea.vmem %s4, %s376
      %p378 = pneg %p164
      %p379 = pneg %p161
      %s380 = sadd.s32 %s24, 2
      %s381 = smul.u32 2, %s380
      %p382 = scmp.lt.s32.totalorder %s381, 7
      %s383 = scalar_select %p382, %s381, 7
      %s384 = scalar_lea.vmem %s5, %s383
      %p385 = pneg %p192
      %p386 = pneg %p189
      %p387 = pneg %p220
      %p388 = pneg %p217
      %s389 = smul.u32 2, %s24
      %p390 = scmp.lt.s32.totalorder %s23, 0
      %s391 = scalar_select %p390, %s23, 0
      %p392 = scmp.lt.s32.totalorder %s389, 3
      %s393 = scalar_select %p392, %s389, 3
      %s394 = smul.addr %s391, 4
      %s395 = sadd.s32 %s393, %s394
      %s396 = smul.addr %s395, 2
      %s397 = scalar_lea.vmem %s6, %s396
      %p398 = pneg %p248
      %p399 = pneg %p245
      %s400 = smul.u32 2, %s24
      %p401 = scmp.lt.s32.totalorder %s23, 0
      %s402 = scalar_select %p401, %s23, 0
      %p403 = scmp.lt.s32.totalorder %s400, 3
      %s404 = scalar_select %p403, %s400, 3
      %s405 = smul.addr %s402, 4
      %s406 = sadd.s32 %s404, %s405
      %s407 = smul.addr %s406, 2
      %s408 = scalar_lea.vmem %s7, %s407
      %s409 = smul.u32 2, %s24
      %p410 = scmp.lt.s32.totalorder %s23, 0
      %s411 = scalar_select %p410, %s23, 0
      %p412 = scmp.lt.s32.totalorder %s409, 7
      %s413 = scalar_select %p412, %s409, 7
      %s414 = smul.addr %s411, 8
      %s415 = sadd.s32 %s413, %s414
      %s416 = smul.addr %s415, 2
      %s417 = scalar_lea.vmem %s0, %s416
      %s418 = smul.u32 2, %s24
      %s419 = sadd.s32 %s24, 2
      %s420 = smul.u32 2, %s419
      %p421 = scmp.lt.s32.totalorder %s23, 0
      %s422 = scalar_select %p421, %s23, 0
      %p423 = scmp.lt.s32.totalorder %s420, 7
      %s424 = scalar_select %p423, %s420, 7
      %s425 = smul.addr %s422, 8
      %s426 = sadd.s32 %s424, %s425
      %s427 = smul.addr %s426, 2
      %s428 = scalar_lea.vmem %s1, %s427
      %s429 = sadd.s32 %s24, 2
      %s430 = smul.u32 2, %s429
      %s431 = smul.u32 2, %s24
      %p432 = scmp.lt.s32.totalorder %s431, 7
      %s433 = scalar_select %p432, %s431, 7
      %s434 = scalar_lea.vmem %s2, %s433
      %s435 = smul.u32 2, %s24
      %s436 = sadd.s32 %s24, 2
      %s437 = smul.u32 2, %s436
      %p438 = scmp.lt.s32.totalorder %s437, 7
      %s439 = scalar_select %p438, %s437, 7
      %s440 = scalar_lea.vmem %s3, %s439
      %s441 = sadd.s32 %s24, 2
      %s442 = smul.u32 2, %s441
      %s443 = smul.u32 2, %s24
      %p444 = scmp.lt.s32.totalorder %s443, 7
      %s445 = scalar_select %p444, %s443, 7
      %s446 = scalar_lea.vmem %s4, %s445
      %s447 = smul.u32 2, %s24
      %s448 = sadd.s32 %s24, 2
      %s449 = smul.u32 2, %s448
      %p450 = scmp.lt.s32.totalorder %s449, 7
      %s451 = scalar_select %p450, %s449, 7
      %s452 = scalar_lea.vmem %s5, %s451
      %s453 = sadd.s32 %s24, 2
      %s454 = smul.u32 2, %s453
      %s455 = smul.u32 2, %s24
      %p456 = scmp.lt.s32.totalorder %s23, 0
      %s457 = scalar_select %p456, %s23, 0
      %p458 = scmp.lt.s32.totalorder %s455, 3
      %s459 = scalar_select %p458, %s455, 3
      %s460 = smul.addr %s457, 4
      %s461 = sadd.s32 %s459, %s460
      %s462 = smul.addr %s461, 2
      %s463 = scalar_lea.vmem %s6, %s462
      %s464 = smul.u32 2, %s24
      %s465 = smul.u32 2, %s24
      %p466 = scmp.lt.s32.totalorder %s23, 0
      %s467 = scalar_select %p466, %s23, 0
      %p468 = scmp.lt.s32.totalorder %s465, 3
      %s469 = scalar_select %p468, %s465, 3
      %s470 = smul.addr %s467, 4
      %s471 = sadd.s32 %s469, %s470
      %s472 = smul.addr %s471, 2
      %s473 = scalar_lea.vmem %s7, %s472
      %s474 = smul.u32 2, %s24
      %v475 = vld [vmem:[%s417] sm:$0xf]
      %v476 = vld [vmem:[%s434] sm:$0x3]
      %v478 = vlaneseq
      %v479 = vshrl.u32 %v478, 7
      %v480 = vsub.s32 0, %v479
      %v481 = vrot.slane %v476, %v480
      %v482 = vlaneseq
      %v483 = vshrl.u32 %v482, 7
      %v484 = vsub.s32 1, %v483
      %v485 = vrot.slane %v476, %v484
      %v486 = vcombine.low %v481, %v485
      %v488 = vunpack.c.l.s4 1983009808
      %v489 = vunpack.c.0.s8 %v488
      %v490 = vlaneseq
      %v491 = vshrl.u32 %v490, 7
      %v492 = vsub.s32 %v489, %v491
      %v493 = vrot.slane %v486, %v492
      %v495 = vmul.f32 %v475, %v493
      %v496 = vld [vmem:[%s446] sm:$0x3]
      %v498 = vlaneseq
      %v499 = vshrl.u32 %v498, 7
      %v500 = vsub.s32 0, %v499
      %v501 = vrot.slane %v496, %v500
      %v502 = vlaneseq
      %v503 = vshrl.u32 %v502, 7
      %v504 = vsub.s32 1, %v503
      %v505 = vrot.slane %v496, %v504
      %v506 = vcombine.low %v501, %v505
      %v508 = vunpack.c.l.s4 1983009808
      %v509 = vunpack.c.0.s8 %v508
      %v510 = vlaneseq
      %v511 = vshrl.u32 %v510, 7
      %v512 = vsub.s32 %v509, %v511
      %v513 = vrot.slane %v506, %v512
      %v515 = vadd.f32 %v495, %v513
      %516 = vst [vmem:[%s463] sm:$0xf] %v515
      %v517 = vld [vmem:[%s428] sm:$0xf]
      %v518 = vld [vmem:[%s440] sm:$0x3]
      %v520 = vlaneseq
      %v521 = vshrl.u32 %v520, 7
      %v522 = vsub.s32 0, %v521
      %v523 = vrot.slane %v518, %v522
      %v524 = vlaneseq
      %v525 = vshrl.u32 %v524, 7
      %v526 = vsub.s32 1, %v525
      %v527 = vrot.slane %v518, %v526
      %v528 = vcombine.low %v523, %v527
      %v530 = vunpack.c.l.s4 1983009808
      %v531 = vunpack.c.0.s8 %v530
      %v532 = vlaneseq
      %v533 = vshrl.u32 %v532, 7
      %v534 = vsub.s32 %v531, %v533
      %v535 = vrot.slane %v528, %v534
      %v537 = vmul.f32 %v517, %v535
      %v538 = vld [vmem:[%s452] sm:$0x3]
      %v540 = vlaneseq
      %v541 = vshrl.u32 %v540, 7
      %v542 = vsub.s32 0, %v541
      %v543 = vrot.slane %v538, %v542
      %v544 = vlaneseq
      %v545 = vshrl.u32 %v544, 7
      %v546 = vsub.s32 1, %v545
      %v547 = vrot.slane %v538, %v546
      %v548 = vcombine.low %v543, %v547
      %v550 = vunpack.c.l.s4 1983009808
      %v551 = vunpack.c.0.s8 %v550
      %v552 = vlaneseq
      %v553 = vshrl.u32 %v552, 7
      %v554 = vsub.s32 %v551, %v553
      %v555 = vrot.slane %v548, %v554
      %v557 = vadd.f32 %v537, %v555
      %558 = vst [vmem:[%s473] sm:$0xf] %v557
      %s559 = smul.u32 2, %s24
      %p560 = scmp.lt.s32.totalorder %s23, 0
      %s561 = scalar_select %p560, %s23, 0
      %p562 = scmp.lt.s32.totalorder %s559, 3
      %s563 = scalar_select %p562, %s559, 3
      %s564 = smul.addr %s561, 4
      %s565 = sadd.s32 %s563, %s564
      %s566 = smul.addr %s565, 2
      %s567 = scalar_lea.vmem %s6, %s566
      %s568 = smul.u32 2, %s24
      %p569 = scmp.lt.s32.totalorder %s23, 0
      %s570 = scalar_select %p569, %s23, 0
      %p571 = scmp.lt.s32.totalorder %s568, 3
      %s572 = scalar_select %p571, %s568, 3
      %s573 = smul.addr %s570, 4
      %s574 = sadd.s32 %s572, %s573
      %s575 = smul.addr %s574, 2
      %s576 = scalar_lea.vmem %s7, %s575
      // Predicated region
      $region45: #{split_op_forward.1} parent=43 // pred_check
        %p577 = pneg %p217
      $region46: #{split_op_forward.1} parent=43 // pred_check_branch
        %579 = sbr.rel (%p577) target = $region48
      $region47: #{split_op_forward.1} parent=43 // pred_region
        %s580 = smul.u32 2, %s24
      $region48: #{split_op_forward.1} parent=43 // pred_fallthru
        _
      // Predicated region
      $region49: #{split_op_forward.1} parent=43 // pred_check
        %p581 = pneg %p245
      $region50: #{split_op_forward.1} parent=43 // pred_check_branch
        %583 = sbr.rel (%p581) target = $region52
      $region51: #{split_op_forward.1} parent=43 // pred_region
        %s584 = smul.u32 2, %s24
      $region52: #{split_op_forward.1} parent=43 // pred_fallthru
        _
    $region44: #{split_op_forward.1} parent=5 // pred_fallthru
      _
    %p585 = scmp.le.s32.totalorder 2, %s14
    // Predicated region
    $region53: #{split_op_forward.1} parent=5 // pred_check
      %p586 = pneg %p585
    $region54: #{split_op_forward.1} parent=5 // pred_check_branch
      %588 = sbr.rel (%p586) target = $region56
    $region55: #{split_op_forward.1} parent=5 // pred_region
      %s589 = ssub.s32 %s14, 2
      // Predicated region
      $region57: #{split_op_forward.1} parent=55 // pred_check
        %p590 = pneg %p223
      $region58: #{split_op_forward.1} parent=55 // pred_check_branch
        %592 = sbr.rel (%p590) target = $region60
      $region59: #{split_op_forward.1} parent=55 // pred_region
        %s593 = smul.u32 2, %s26
        %p594 = scmp.lt.s32.totalorder %s25, 0
        %s595 = scalar_select %p594, %s25, 0
        %p596 = scmp.lt.s32.totalorder %s593, 3
        %s597 = scalar_select %p596, %s593, 3
        %s598 = smul.addr %s595, 4
        %s599 = sadd.s32 %s597, %s598
        %s600 = smul.addr %s599, 2
        %s601 = scalar_lea.vmem %s6, %s600
      $region60: #{split_op_forward.1} parent=55 // pred_fallthru
        _
      // Predicated region
      $region61: #{split_op_forward.1} parent=55 // pred_check
        %p602 = pneg %p251
      $region62: #{split_op_forward.1} parent=55 // pred_check_branch
        %604 = sbr.rel (%p602) target = $region64
      $region63: #{split_op_forward.1} parent=55 // pred_region
        %s605 = smul.u32 2, %s26
        %p606 = scmp.lt.s32.totalorder %s25, 0
        %s607 = scalar_select %p606, %s25, 0
        %p608 = scmp.lt.s32.totalorder %s605, 3
        %s609 = scalar_select %p608, %s605, 3
        %s610 = smul.addr %s607, 4
        %s611 = sadd.s32 %s609, %s610
        %s612 = smul.addr %s611, 2
        %s613 = scalar_lea.vmem %s7, %s612
      $region64: #{split_op_forward.1} parent=55 // pred_fallthru
        _
    $region56: #{split_op_forward.1} parent=5 // pred_fallthru
      _
  $region6: #{split_op_forward.1} parent=0 // loop_footer
    %s18 = sadd.s32 1, %s14
  $region7: #{split_op_forward.1} parent=0 // loop_footer_branch
    %13 = sbr.rel target = $region3
  $region8: #{split_op_forward.1} parent=0 // loop_exit
    _

</llo_original>
